<compile_context>
chip_gen: v7x
topology: tpu7x:2x2x1
jax: 0.10.0
libtpu: 0.0.40
codegen_flags: <defaults>
</compile_context>

<pallas_src>
import jax
import jax.numpy as jnp
from jax import lax
from jax.experimental import pallas as pl
from jax.experimental.pallas import tpu as pltpu


def attention_kernel(v_ref, qm_ref, wvt_ref, wxt_ref, bx_ref, o_ref):
    # v_ref  : (B_blk, Cv, HW_t)  f32   -- channels-first, spatial on lanes
    # qm_ref : (B_blk, M, 1)      bf16  -- precomputed q_lin(q) per-batch column
    # wvt_ref: (M, Cv)            bf16  -- v_conv weight (out, in); 1x1 conv == matmul
    # wxt_ref: (G, M)             bf16  -- x_conv weight (out, in)
    # bx_ref : (G, 1)             f32   -- x_conv bias
    # o_ref  : (B_blk, G, HW_t)
    wvt = wvt_ref[...]
    wxt = wxt_ref[...]
    hw_t = o_ref.shape[-1]
    # Hoisted bias broadcast: JAX does not CSE broadcast_in_dim, so build it once.
    bxb = jnp.broadcast_to(bx_ref[...], (wxt.shape[0], hw_t))              # (G, HW_t) f32
    b_blk = v_ref.shape[0]

    def body(b, carry):
        # bf16 cast happens in VMEM (hides under the MXU); v is read from HBM as f32 once.
        vb = v_ref[b].astype(jnp.bfloat16)                                 # (Cv, HW_t)
        # v_conv: per-pixel channel matmul, spatial stays on the lane axis.
        vm = jnp.dot(wvt, vb, preferred_element_type=jnp.float32)          # (M, HW_t) f32
        # tile_2d_over_nd + add + ReLU: qm column broadcasts over lanes, f32 VPU math.
        qcol = qm_ref[b].astype(jnp.float32)                               # (M, 1)
        h = jnp.maximum(vm + qcol, 0.0)                                    # (M, HW_t) f32
        # x_conv (1x1 conv with bias); output lanes = spatial -> dense stores.
        out = jnp.dot(wxt, h.astype(jnp.bfloat16),
                      preferred_element_type=jnp.float32) + bxb            # (G, HW_t) f32
        o_ref[b] = out.astype(o_ref.dtype)
        return carry

    # fori_loop bounds the (M, HW_t) temporaries to a single live iteration (a static
    # Python unroll keeps several alive); fully unroll only small batch blocks.
    lax.fori_loop(0, b_blk, body, 0, unroll=b_blk <= 4)


def _vmem_capacity_bytes():
    """Physical per-core VMEM (128 MiB on v5e/v6e, 64 MiB on v7x); conservative fallback."""
    try:
        info = pltpu.get_tpu_info()
        cap = getattr(info, "vmem_capacity_bytes", None)
        if cap:
            return int(cap)
    except Exception:
        pass
    return 64 << 20


def _spatial_tile(hw, cap):
    """Full spatial extent if small; else the largest divisor <= cap that is a multiple of
    256 (MXU/vst-dense on v6e/v7x), falling back to 128-multiples."""
    if hw <= cap:
        return hw
    for step in (256, 128):
        cands = [t for t in range(step, cap + 1, step) if hw % t == 0]
        if cands:
            return cands[-1]
    # TODO(synk): if HW has no 128-multiple divisor, pad the spatial axis instead of
    # falling back to a full-extent (potentially VMEM-heavy) tile.
    return hw


def _estimate_vmem_bytes(b_blk, hw_t, cv, m, g, out_bytes):
    """Working-set estimate: double-buffered v/qm/out blocks + resident weights +
    per-iteration temporaries (vb bf16, vm/h f32, h bf16, out f32)."""
    g8 = ((g + 7) // 8) * 8
    m8 = ((m + 7) // 8) * 8
    v_blk = 2 * b_blk * cv * hw_t * 4                 # f32 input, double-buffered
    qm_blk = 2 * b_blk * m8 * 128 * 2                 # bf16, last dim lane-padded to 128
    o_blk = 2 * b_blk * g8 * hw_t * out_bytes
    weights = m8 * max(cv, 128) * 2 + g8 * max(m, 128) * 2 + g8 * 128 * 4
    temps = (cv * 2 + m * 10 + g8 * 4) * hw_t
    return v_blk + qm_blk + o_blk + weights + temps


def _pick_tiling(n, cv, m, g, hw, out_bytes):
    """Per-generation b_blk / hw_t and an explicit scoped-VMEM limit."""
    cap = _vmem_capacity_bytes()
    big_vmem = cap >= (100 << 20)                     # v5e / v6e (128 MiB) vs v7x (64 MiB)
    vmem_limit = cap * 3 // 4                         # ~96 MiB on v5e/v6e, ~48 MiB on v7x
    work_budget = vmem_limit * 3 // 5                 # headroom for spills / internal scratch
    hw_cap = 1024 if big_vmem else 512
    max_blk = 8 if big_vmem else 4

    hw_t = _spatial_tile(hw, hw_cap)

    def fits(b, t):
        return _estimate_vmem_bytes(b, t, cv, m, g, out_bytes) <= work_budget

    divisors = [b for b in range(min(n, max_blk), 0, -1) if n % b == 0]
    b_blk = 1
    # Prefer >= 4 independent grid steps (feeds v7x's two TensorCores), accept >= 2, and
    # only then a single step; within that, the largest batch block that fits VMEM.
    for want_steps in (4, 2, 1):
        ok = [b for b in divisors
              if (n // b) * (hw // hw_t) >= want_steps and fits(b, hw_t)]
        if ok:
            b_blk = ok[0]
            break
    # If even b_blk == 1 does not fit, shrink the spatial tile (keeps 128-alignment).
    while not fits(b_blk, hw_t) and hw_t % 256 == 0 and hw_t > 256:
        hw_t //= 2
    return b_blk, hw_t, vmem_limit


def _const_spec(shape):
    """BlockSpec for a grid-constant operand; single-buffered when supported (Pallas does
    not re-DMA a block whose index never changes, so one buffer saves VMEM)."""
    idx = lambda bi, hi: (0,) * len(shape)
    try:
        return pl.BlockSpec(shape, idx, pipeline_mode=pl.Buffered(1))
    except TypeError:
        return pl.BlockSpec(shape, idx)


def attention_forward(v_nchw, q, wv, wq, bq, wx, bx):
    """v_nchw: (N, Cv, H, W), q: (N, Cq). Returns (N, G, H, W) like the PyTorch module
    (eval mode / drop=0: dropout is the identity)."""
    N, Cv, H, W = v_nchw.shape
    M = wv.shape[1]
    G = wx.shape[1]
    HW = H * W
    out_dtype = v_nchw.dtype

    # Channels-first flatten: NCHW -> (N, Cv, HW). Pure reshape; v stays f32 so there is
    # no extra HBM cast pass -- the bf16 cast happens inside the kernel.
    v_flat = v_nchw.reshape(N, Cv, HW)

    # Hoist q_lin out of the kernel: one dense (N, Cq) x (Cq, M) GEMM in XLA.
    qm = q.astype(jnp.float32) @ wq.astype(jnp.float32) + bq.astype(jnp.float32)   # (N, M)
    # bf16 halves the lane-padded (b_blk, M, 1) VMEM block; accumulation stays f32.
    qm_col = qm[:, :, None].astype(jnp.bfloat16)                                   # (N, M, 1)

    # Tiny weights, transposed once so the kernel computes W @ x (channels-first).
    wvt = wv.T.astype(jnp.bfloat16)                    # (M, Cv)
    wxt = wx.T.astype(jnp.bfloat16)                    # (G, M)
    bx_col = bx.reshape(G, 1).astype(jnp.float32)      # (G, 1)

    b_blk, hw_t, vmem_limit = _pick_tiling(N, Cv, M, G, HW, jnp.dtype(out_dtype).itemsize)
    grid = (N // b_blk, HW // hw_t)

    out_flat = pl.pallas_call(
        attention_kernel,
        out_shape=jax.ShapeDtypeStruct((N, G, HW), out_dtype),
        grid_spec=pltpu.PrefetchScalarGridSpec(
            num_scalar_prefetch=0,
            grid=grid,
            in_specs=[
                pl.BlockSpec((b_blk, Cv, hw_t), lambda bi, hi: (bi, 0, hi)),  # v (batch/HW tiled)
                pl.BlockSpec((b_blk, M, 1), lambda bi, hi: (bi, 0, 0)),       # qm column (per batch)
                _const_spec((M, Cv)),                                         # v_conv W^T (resident)
                _const_spec((G, M)),                                          # x_conv W^T (resident)
                _const_spec((G, 1)),                                          # x_conv bias (resident)
            ],
            out_specs=pl.BlockSpec((b_blk, G, hw_t), lambda bi, hi: (bi, 0, hi)),
        ),
        compiler_params=pltpu.CompilerParams(
            # Both grid axes are independent -> megacore-shardable; _pick_tiling
            # guarantees >= 2 grid steps so neither v7x TensorCore idles.
            dimension_semantics=("parallel", "parallel"),
            vmem_limit_bytes=vmem_limit,
        ),
    )(v_flat, qm_col, wvt, wxt, bx_col)

    # (N, G, HW) -> (N, G, H, W): pure reshape, PyTorch NCHW output convention.
    return out_flat.reshape(N, G, H, W)


def attention_reference(v_nchw, q, wv, wq, bq, wx, bx):
    """Pure-JAX f32 reference mirroring the PyTorch forward (drop=0 => dropout is identity)."""
    v = jnp.einsum("nchw,cm->nmhw", v_nchw, wv)                 # v_conv (no bias)
    qm = q @ wq + bq                                            # q_lin
    qt = qm[:, :, None, None]                                   # tile_2d_over_nd
    h = jnp.maximum(v + qt, 0.0)                                # relu(v + q)
    x = jnp.einsum("nmhw,mg->nghw", h, wx) + bx[0][None, :, None, None]  # x_conv
    return x


if __name__ == "__main__":
    # Module hyper-parameters (small, consistent with the forward pass)
    N, H, W = 2, 8, 8
    v_features, q_features, mid_features, glimpses = 32, 16, 32, 4

    key = jax.random.PRNGKey(0)
    kv, kq, kwv, kwq, kbq, kwx, kbx = jax.random.split(key, 7)

    # Inputs
    v = jax.random.normal(kv, (N, v_features, H, W), dtype=jnp.float32)
    q = jax.random.normal(kq, (N, q_features), dtype=jnp.float32)

    # Deterministic parameter init (shapes from the module's __init__).
    # PyTorch stores conv weight as (out, in, 1, 1) and linear weight as (out, in);
    # here they are kept pre-transposed to (in, out); the wrapper re-transposes the tiny
    # weights to (out, in) for the channels-first kernel.
    wv = 0.1 * jax.random.normal(kwv, (v_features, mid_features), dtype=jnp.float32)  # v_conv (no bias)
    wq = 0.1 * jax.random.normal(kwq, (q_features, mid_features), dtype=jnp.float32)  # q_lin weight
    bq = 0.1 * jax.random.normal(kbq, (1, mid_features), dtype=jnp.float32)           # q_lin bias
    wx = 0.1 * jax.random.normal(kwx, (mid_features, glimpses), dtype=jnp.float32)    # x_conv weight
    bx = 0.1 * jax.random.normal(kbx, (1, glimpses), dtype=jnp.float32)               # x_conv bias

    out = attention_forward(v, q, wv, wq, bq, wx, bx)
    out = jax.block_until_ready(out)

    ref = attention_reference(v, q, wv, wq, bq, wx, bx)
    assert out.shape == (N, glimpses, H, W)
    # bf16 MXU operands (v, weights, qm) with f32 accumulation; observed error ~1e-3 at
    # these magnitudes.
    assert jnp.allclose(out, ref, atol=2e-2, rtol=2e-2)

    print("KERNEL_OK")
</pallas_src>

<mosaic_0001>
module attributes {stable_mosaic.version = 11 : i64} {
  func.func @attention_kernel(%arg0: i32, %arg1: i32, %arg2: memref<1x32x64xf32, #tpu.memory_space<vmem>>, %arg3: memref<1x32x1xbf16, #tpu.memory_space<vmem>>, %arg4: memref<32x32xbf16, #tpu.memory_space<vmem>>, %arg5: memref<4x32xbf16, #tpu.memory_space<vmem>>, %arg6: memref<4x1xf32, #tpu.memory_space<vmem>>, %arg7: memref<1x4x64xf32, #tpu.memory_space<vmem>>) attributes {dimension_semantics = [#tpu.dimension_semantics<parallel>, #tpu.dimension_semantics<parallel>], iteration_bounds = array<i64: 2, 1>, scalar_prefetch = 0 : i64, scratch_operands = 0 : i64, tpu.core_type = #tpu.core_type<tc>, window_params = [{transform_indices = @transform_0, window_bounds = array<i64: 1, 32, 64>}, {transform_indices = @transform_1, window_bounds = array<i64: 1, 32, 1>}, {pipeline_mode = #tpu.pipeline_mode<synchronous>, transform_indices = @transform_2, window_bounds = array<i64: 32, 32>}, {pipeline_mode = #tpu.pipeline_mode<synchronous>, transform_indices = @transform_3, window_bounds = array<i64: 4, 32>}, {pipeline_mode = #tpu.pipeline_mode<synchronous>, transform_indices = @transform_4, window_bounds = array<i64: 4, 1>}, {transform_indices = @transform_5, window_bounds = array<i64: 1, 4, 64>}]} {
    %c0 = arith.constant 0 : index
    %c0_0 = arith.constant 0 : index
    %0 = vector.load %arg4[%c0, %c0_0] : memref<32x32xbf16, #tpu.memory_space<vmem>>, vector<32x32xbf16>
    %c0_1 = arith.constant 0 : index
    %c0_2 = arith.constant 0 : index
    %1 = vector.load %arg5[%c0_1, %c0_2] : memref<4x32xbf16, #tpu.memory_space<vmem>>, vector<4x32xbf16>
    %c0_3 = arith.constant 0 : index
    %c0_4 = arith.constant 0 : index
    %2 = vector.load %arg6[%c0_3, %c0_4] : memref<4x1xf32, #tpu.memory_space<vmem>>, vector<4x1xf32>
    %3 = vector.shape_cast %2 : vector<4x1xf32> to vector<4x1xf32>
    %4 = vector.broadcast %3 : vector<4x1xf32> to vector<4x64xf32>
    %c0_i32 = arith.constant 0 : i32
    %5 = arith.index_cast %c0_i32 : i32 to index
    %c0_5 = arith.constant 0 : index
    %c0_6 = arith.constant 0 : index
    %6 = vector.load %arg2[%5, %c0_5, %c0_6] : memref<1x32x64xf32, #tpu.memory_space<vmem>>, vector<1x32x64xf32>
    %7 = vector.shape_cast %6 : vector<1x32x64xf32> to vector<32x64xf32>
    %8 = arith.truncf %7 : vector<32x64xf32> to vector<32x64xbf16>
    %cst = arith.constant dense<0.000000e+00> : vector<32x64xf32>
    %9 = tpu.matmul %0, %8, %cst {dimension_numbers = #tpu.dot_dimension_numbers<[1], [0], [0], [1], [0, 0, 1, 1], [], []>} : vector<32x32xbf16>, vector<32x64xbf16>, vector<32x64xf32> -> vector<32x64xf32>
    %10 = arith.index_cast %c0_i32 : i32 to index
    %c0_7 = arith.constant 0 : index
    %c0_8 = arith.constant 0 : index
    %11 = vector.load %arg3[%10, %c0_7, %c0_8] : memref<1x32x1xbf16, #tpu.memory_space<vmem>>, vector<1x32x1xbf16>
    %12 = vector.shape_cast %11 : vector<1x32x1xbf16> to vector<32x1xbf16>
    %13 = arith.extf %12 : vector<32x1xbf16> to vector<32x1xf32>
    %14 = vector.broadcast %13 : vector<32x1xf32> to vector<32x64xf32>
    %15 = arith.addf %9, %14 : vector<32x64xf32>
    %cst_9 = arith.constant 0.000000e+00 : f32
    %16 = vector.broadcast %cst_9 : f32 to vector<32x64xf32>
    %17 = arith.maximumf %15, %16 : vector<32x64xf32>
    %18 = arith.truncf %17 : vector<32x64xf32> to vector<32x64xbf16>
    %cst_10 = arith.constant dense<0.000000e+00> : vector<4x64xf32>
    %19 = tpu.matmul %1, %18, %cst_10 {dimension_numbers = #tpu.dot_dimension_numbers<[1], [0], [0], [1], [0, 0, 1, 1], [], []>} : vector<4x32xbf16>, vector<32x64xbf16>, vector<4x64xf32> -> vector<4x64xf32>
    %20 = arith.addf %19, %4 : vector<4x64xf32>
    %21 = arith.index_cast %c0_i32 : i32 to index
    %c0_11 = arith.constant 0 : index
    %c0_12 = arith.constant 0 : index
    %22 = vector.load %arg7[%21, %c0_11, %c0_12] : memref<1x4x64xf32, #tpu.memory_space<vmem>>, vector<1x4x64xf32>
    %23 = vector.shape_cast %22 : vector<1x4x64xf32> to vector<4x64xf32>
    %24 = vector.shape_cast %20 : vector<4x64xf32> to vector<1x4x64xf32>
    tpu.vector_store %arg7[%21, %c0_11, %c0_12], %24 {strides = array<i32>} : memref<1x4x64xf32, #tpu.memory_space<vmem>>, vector<1x4x64xf32>,
    %c1_i32 = arith.constant 1 : i32
    return
  }
  func.func @transform_0(%arg0: i32, %arg1: i32) -> (i32, i32, i32) {
    %c0_i32 = arith.constant 0 : i32
    %c0_i32_0 = arith.constant 0 : i32
    return %arg0, %c0_i32, %arg1 : i32, i32, i32
  }
  func.func @transform_1(%arg0: i32, %arg1: i32) -> (i32, i32, i32) {
    %c0_i32 = arith.constant 0 : i32
    %c0_i32_0 = arith.constant 0 : i32
    %c0_i32_1 = arith.constant 0 : i32
    return %arg0, %c0_i32, %c0_i32_0 : i32, i32, i32
  }
  func.func @transform_2(%arg0: i32, %arg1: i32) -> (i32, i32) {
    %c0_i32 = arith.constant 0 : i32
    %c0_i32_0 = arith.constant 0 : i32
    %c0_i32_1 = arith.constant 0 : i32
    return %c0_i32, %c0_i32_0 : i32, i32
  }
  func.func @transform_3(%arg0: i32, %arg1: i32) -> (i32, i32) {
    %c0_i32 = arith.constant 0 : i32
    %c0_i32_0 = arith.constant 0 : i32
    %c0_i32_1 = arith.constant 0 : i32
    return %c0_i32, %c0_i32_0 : i32, i32
  }
  func.func @transform_4(%arg0: i32, %arg1: i32) -> (i32, i32) {
    %c0_i32 = arith.constant 0 : i32
    %c0_i32_0 = arith.constant 0 : i32
    %c0_i32_1 = arith.constant 0 : i32
    return %c0_i32, %c0_i32_0 : i32, i32
  }
  func.func @transform_5(%arg0: i32, %arg1: i32) -> (i32, i32, i32) {
    %c0_i32 = arith.constant 0 : i32
    %c0_i32_0 = arith.constant 0 : i32
    return %arg0, %c0_i32, %arg1 : i32, i32, i32
  }
}

</mosaic_0001>

<llo_original>
// kernel: tpu_custom_call.1
$region0: #{tpu_custom_call.1}
  #allocation0 [shape = 'u32[]', space=smem, size = 0x4, offset = 0x4, fixed_abs, tag = 'smem constant byte address 0x4 - core index']
  #allocation1 [shape = 'u32[144,128]{1,0:T(1,128)}', space=vmem, size = 0x12000, scoped, tag = 'internal scratch']
  %s0 = inlined_call_operand.hbm [shape: f32[2,32,64], index: 0, kind: input, shape index: {}]
  %s1 = inlined_call_operand.vmem [shape: bf16[2,32,1], index: 1, kind: input, shape index: {}]
  %s2 = inlined_call_operand.vmem [shape: bf16[32,32], index: 2, kind: input, shape index: {}]
  %s3 = inlined_call_operand.vmem [shape: bf16[4,32], index: 3, kind: input, shape index: {}]
  %s4 = inlined_call_operand.vmem [shape: f32[4,1], index: 4, kind: input, shape index: {}]
  %s5 = inlined_call_operand.hbm [shape: f32[2,4,64], index: 5, kind: output, shape index: {}]
  %s6 = sld [smem:[#allocation0]]
  $region57: #{tpu_custom_call.1} parent=0
    _
  %s8 = ssub.s32 1, %s6
  %s9 = scalar_select 0, %s8, %s6
  $region1: #{tpu_custom_call.1} parent=0
    #allocation2 [shape = 'u8[32768]{0}', space=vmem, size = 0x8000, scoped, tag = 'input window, operand 0']
    #allocation3 [shape = 's32[2]{0}', space=sflag, size = 0x8, scoped, tag = 'scoped memory for tpu_custom_call.1']
    #allocation4 [shape = 's32[2]{0}', space=sflag, size = 0x8, scoped, tag = 'scoped memory for tpu_custom_call.1']
    #allocation5 [shape = 'u8[4096]{0}', space=vmem, size = 0x1000, scoped, tag = 'output window, operand 0']
    %10 = vsyncpa [#allocation3], 0
    %s11 = scalar_lea.sflag [#allocation3], 1
    %12 = vsyncpa %s11, 0
    %13 = vsyncpa [#allocation4], 0
    %s14 = scalar_lea.sflag [#allocation4], 1
    %15 = vsyncpa %s14, 0
    loop: start=0, step=1, limit=4
    $region2: #{tpu_custom_call.1} parent=1 // loop_pre_header
      _
    $region3: #{tpu_custom_call.1} parent=1 // loop_header
      %s17 = sphi 0, %s21
      %p18 = scmp.ge.s32.totalorder %s17, 4
      %s24 = sphi 0, %s36
      %s25 = sphi 0, %s32
      %s26 = sphi 0, %s24
      %s27 = sphi 0, %s25
      %s28 = sphi 0, %s26
      %s29 = sphi 0, %s27
      %s41 = sphi 0, %s43
      %s44 = sphi 0, %s41
      %s45 = sphi 0, %s44
      %s61 = sphi 0, %s45
      %s67 = sphi 0, %s69
      %s70 = sphi 0, %s67
      %s71 = sphi 0, %s70
      %s87 = sphi 0, %s71
      %s91 = sphi 0, %s91
      %s93 = sphi 0, %s91
      %s94 = sphi 0, %s93
      %s108 = sphi 0, %s94
      %s112 = sphi 0, %s112
      %s114 = sphi 0, %s112
      %s115 = sphi 0, %s114
      %s129 = sphi 0, %s115
      %s133 = sphi 0, %s133
      %s135 = sphi 0, %s133
      %s136 = sphi 0, %s135
      %s150 = sphi 0, %s136
      %s158 = sphi 0, %s160
      %s161 = sphi 0, %s158
      %s162 = sphi 0, %s161
      %s178 = sphi 0, %s162
    $region4: #{tpu_custom_call.1} parent=1 // loop_header_branch
      %20 = sbr.rel (%p18) target = $region8
    $region5: #{tpu_custom_call.1} parent=1 // loop_body
      %s22 = ssub.s32 %s17, 1
      %s23 = ssub.s32 %s17, 2
      %s30 = sadd.s32 1, %s25
      %p31 = scmp.ge.s32.totalorder %s30, 1
      %s32 = scalar_select %p31, 0, %s30
      %s33 = sadd.s32 1, %s24
      %s34 = scalar_select %p31, %s33, %s24
      %p35 = scmp.ge.s32.totalorder %s34, 2
      %s36 = scalar_select %p35, 0, %s34
      %s37 = ssub.s32 %s24, %s36
      %s38 = ssub.s32 %s25, %s32
      %s39 = sor.u32 %s37, %s38
      %p40 = scmp.eq.s32.totalorder %s39, 0
      %s42 = sadd.s32 %s41, 1
      %s43 = scalar_select %p40, %s41, %s42
      %p46 = pneg %p40
      %p47 = scmp.eq.s32.totalorder %s17, 1
      %p48 = por %p46, %p47
      %p49 = scmp.ne.s32.totalorder %s41, %s44
      %p50 = scmp.eq.s32.totalorder %s17, 0
      %p51 = por %p49, %p50
      %p52 = scmp.ne.s32.totalorder %s41, %s44
      %p53 = scmp.eq.s32.totalorder %s22, 1
      %p54 = por %p52, %p53
      %p55 = scmp.ne.s32.totalorder %s44, %s45
      %p56 = scmp.eq.s32.totalorder %s22, 0
      %p57 = por %p55, %p56
      %p58 = scmp.ne.s32.totalorder %s44, %s45
      %p59 = scmp.eq.s32.totalorder %s23, 1
      %p60 = por %p58, %p59
      %p62 = scmp.ne.s32.totalorder %s45, %s61
      %p63 = scmp.eq.s32.totalorder %s23, 0
      %p64 = por %p62, %p63
      %s65 = ssub.s32 %s24, %s36
      %p66 = scmp.eq.s32.totalorder %s65, 0
      %s68 = sadd.s32 %s67, 1
      %s69 = scalar_select %p66, %s67, %s68
      %p72 = pneg %p66
      %p73 = scmp.eq.s32.totalorder %s17, 1
      %p74 = por %p72, %p73
      %p75 = scmp.ne.s32.totalorder %s67, %s70
      %p76 = scmp.eq.s32.totalorder %s17, 0
      %p77 = por %p75, %p76
      %p78 = scmp.ne.s32.totalorder %s67, %s70
      %p79 = scmp.eq.s32.totalorder %s22, 1
      %p80 = por %p78, %p79
      %p81 = scmp.ne.s32.totalorder %s70, %s71
      %p82 = scmp.eq.s32.totalorder %s22, 0
      %p83 = por %p81, %p82
      %p84 = scmp.ne.s32.totalorder %s70, %s71
      %p85 = scmp.eq.s32.totalorder %s23, 1
      %p86 = por %p84, %p85
      %p88 = scmp.ne.s32.totalorder %s71, %s87
      %p89 = scmp.eq.s32.totalorder %s23, 0
      %p90 = por %p88, %p89
      %s92 = sadd.s32 %s91, 1
      %p95 = scmp.eq.s32.totalorder %s17, 1
      %p96 = scmp.ne.s32.totalorder %s91, %s93
      %p97 = scmp.eq.s32.totalorder %s17, 0
      %p98 = por %p96, %p97
      %p99 = scmp.ne.s32.totalorder %s91, %s93
      %p100 = scmp.eq.s32.totalorder %s22, 1
      %p101 = por %p99, %p100
      %p102 = scmp.ne.s32.totalorder %s93, %s94
      %p103 = scmp.eq.s32.totalorder %s22, 0
      %p104 = por %p102, %p103
      %p105 = scmp.ne.s32.totalorder %s93, %s94
      %p106 = scmp.eq.s32.totalorder %s23, 1
      %p107 = por %p105, %p106
      %p109 = scmp.ne.s32.totalorder %s94, %s108
      %p110 = scmp.eq.s32.totalorder %s23, 0
      %p111 = por %p109, %p110
      %s113 = sadd.s32 %s112, 1
      %p116 = scmp.eq.s32.totalorder %s17, 1
      %p117 = scmp.ne.s32.totalorder %s112, %s114
      %p118 = scmp.eq.s32.totalorder %s17, 0
      %p119 = por %p117, %p118
      %p120 = scmp.ne.s32.totalorder %s112, %s114
      %p121 = scmp.eq.s32.totalorder %s22, 1
      %p122 = por %p120, %p121
      %p123 = scmp.ne.s32.totalorder %s114, %s115
      %p124 = scmp.eq.s32.totalorder %s22, 0
      %p125 = por %p123, %p124
      %p126 = scmp.ne.s32.totalorder %s114, %s115
      %p127 = scmp.eq.s32.totalorder %s23, 1
      %p128 = por %p126, %p127
      %p130 = scmp.ne.s32.totalorder %s115, %s129
      %p131 = scmp.eq.s32.totalorder %s23, 0
      %p132 = por %p130, %p131
      %s134 = sadd.s32 %s133, 1
      %p137 = scmp.eq.s32.totalorder %s17, 1
      %p138 = scmp.ne.s32.totalorder %s133, %s135
      %p139 = scmp.eq.s32.totalorder %s17, 0
      %p140 = por %p138, %p139
      %p141 = scmp.ne.s32.totalorder %s133, %s135
      %p142 = scmp.eq.s32.totalorder %s22, 1
      %p143 = por %p141, %p142
      %p144 = scmp.ne.s32.totalorder %s135, %s136
      %p145 = scmp.eq.s32.totalorder %s22, 0
      %p146 = por %p144, %p145
      %p147 = scmp.ne.s32.totalorder %s135, %s136
      %p148 = scmp.eq.s32.totalorder %s23, 1
      %p149 = por %p147, %p148
      %p151 = scmp.ne.s32.totalorder %s136, %s150
      %p152 = scmp.eq.s32.totalorder %s23, 0
      %p153 = por %p151, %p152
      %s154 = ssub.s32 %s24, %s36
      %s155 = ssub.s32 %s25, %s32
      %s156 = sor.u32 %s154, %s155
      %p157 = scmp.eq.s32.totalorder %s156, 0
      %s159 = sadd.s32 %s158, 1
      %s160 = scalar_select %p157, %s158, %s159
      %p163 = pneg %p157
      %p164 = scmp.eq.s32.totalorder %s17, 1
      %p165 = por %p163, %p164
      %p166 = scmp.ne.s32.totalorder %s158, %s161
      %p167 = scmp.eq.s32.totalorder %s17, 0
      %p168 = por %p166, %p167
      %p169 = scmp.ne.s32.totalorder %s158, %s161
      %p170 = scmp.eq.s32.totalorder %s22, 1
      %p171 = por %p169, %p170
      %p172 = scmp.ne.s32.totalorder %s161, %s162
      %p173 = scmp.eq.s32.totalorder %s22, 0
      %p174 = por %p172, %p173
      %p175 = scmp.ne.s32.totalorder %s161, %s162
      %p176 = scmp.eq.s32.totalorder %s23, 1
      %p177 = por %p175, %p176
      %p179 = scmp.ne.s32.totalorder %s162, %s178
      %p180 = scmp.eq.s32.totalorder %s23, 0
      %p181 = por %p179, %p180
      %p182 = scmp.le.s32.totalorder 1, %s17
      %p183 = scmp.lt.s32.totalorder %s17, 3
      %p184 = pnand %p182, %p183
      %p185 = pneg %p184
      // Predicated region
      $region9: #{tpu_custom_call.1} parent=5 // pred_check
        _
      $region10: #{tpu_custom_call.1} parent=5 // pred_check_branch
        %187 = sbr.rel (%p184) target = $region12
      $region11: #{tpu_custom_call.1} parent=5 // pred_region
        %s188 = ssub.s32 %s17, 1
        // Predicated region
        $region13: #{tpu_custom_call.1} parent=11 // pred_check
          %p189 = pneg %p104
        $region14: #{tpu_custom_call.1} parent=11 // pred_check_branch
          %191 = sbr.rel (%p189) target = $region16
        $region15: #{tpu_custom_call.1} parent=11 // pred_region
          _
        $region16: #{tpu_custom_call.1} parent=11 // pred_fallthru
          _
        // Predicated region
        $region17: #{tpu_custom_call.1} parent=11 // pred_check
          %p192 = pneg %p125
        $region18: #{tpu_custom_call.1} parent=11 // pred_check_branch
          %194 = sbr.rel (%p192) target = $region20
        $region19: #{tpu_custom_call.1} parent=11 // pred_region
          _
        $region20: #{tpu_custom_call.1} parent=11 // pred_fallthru
          _
        // Predicated region
        $region21: #{tpu_custom_call.1} parent=11 // pred_check
          %p195 = pneg %p146
        $region22: #{tpu_custom_call.1} parent=11 // pred_check_branch
          %197 = sbr.rel (%p195) target = $region24
        $region23: #{tpu_custom_call.1} parent=11 // pred_region
          _
        $region24: #{tpu_custom_call.1} parent=11 // pred_fallthru
          _
      $region12: #{tpu_custom_call.1} parent=5 // pred_fallthru
        _
      %p198 = scmp.lt.s32.totalorder %s17, 2
      // Predicated region
      $region25: #{tpu_custom_call.1} parent=5 // pred_check
        %p199 = pneg %p198
      $region26: #{tpu_custom_call.1} parent=5 // pred_check_branch
        %201 = sbr.rel (%p199) target = $region28
      $region27: #{tpu_custom_call.1} parent=5 // pred_region
        // Predicated region
        $region29: #{tpu_custom_call.1} parent=27 // pred_check
          %p202 = pneg %p51
        $region30: #{tpu_custom_call.1} parent=27 // pred_check_branch
          %204 = sbr.rel (%p202) target = $region32
        $region31: #{tpu_custom_call.1} parent=27 // pred_region
          %s205 = sand.u32 %s41, 1
          %s206 = scalar_lea.sflag [#allocation3], %s205
          %s207 = sand.u32 %s41, 1
          %s208 = smul.addr %s207, 32
          %s209 = scalar_lea.vmem [#allocation2], %s208
          %s211 = ssub.s32 512, 512
          %212 = vsyncadd %s206, %s211
          %s213 = smul.addr %s24, 4
          %s214 = sadd.s32 %s25, %s213
          %s215 = smul.addr %s214, 128
          %s216 = scalar_lea.hbm %s0, %s215
          %s217 = sshll.u32 %s209, 4
          %s218 = int_to_ptr.vmem [resolvable:$true] %s217
          %223 = dma.hbm_to_vmem [thread:$0]  %s216, 512, %s218, %s206, 128, 128, 8
        $region32: #{tpu_custom_call.1} parent=27 // pred_fallthru
          _
        // Predicated region
        $region33: #{tpu_custom_call.1} parent=27 // pred_check
          %p224 = pneg %p77
        $region34: #{tpu_custom_call.1} parent=27 // pred_check_branch
          %226 = sbr.rel (%p224) target = $region36
        $region35: #{tpu_custom_call.1} parent=27 // pred_region
          %p227 = scmp.lt.s32.totalorder %s24, 1
          %s228 = scalar_select %p227, %s24, 1
          %s229 = smul.addr %s228, 4
          %s230 = smul.addr %s229, 4
          %s231 = scalar_lea.vmem %s1, %s230
        $region36: #{tpu_custom_call.1} parent=27 // pred_fallthru
          _
      $region28: #{tpu_custom_call.1} parent=5 // pred_fallthru
        _
      %p232 = scmp.le.s32.totalorder 1, %s17
      %p233 = scmp.lt.s32.totalorder %s17, 3
      %p234 = pnand %p232, %p233
      %p235 = pneg %p234
      // Predicated region
      $region37: #{tpu_custom_call.1} parent=5 // pred_check
        _
      $region38: #{tpu_custom_call.1} parent=5 // pred_check_branch
        %237 = sbr.rel (%p234) target = $region40
      $region39: #{tpu_custom_call.1} parent=5 // pred_region
        %s238 = ssub.s32 %s17, 1
        %s239 = sand.u32 %s44, 1
        %s240 = scalar_lea.sflag [#allocation3], %s239
        %s241 = sand.u32 %s44, 1
        %s242 = smul.addr %s241, 32
        %s243 = scalar_lea.vmem [#allocation2], %s242
        // Predicated region
        $region41: #{tpu_custom_call.1} parent=39 // pred_check
          %p244 = pneg %p57
        $region42: #{tpu_custom_call.1} parent=39 // pred_check_branch
          %246 = sbr.rel (%p244) target = $region44
        $region43: #{tpu_custom_call.1} parent=39 // pred_region
          %247 = dma.done %s240, 512
        $region44: #{tpu_custom_call.1} parent=39 // pred_fallthru
          _
        %s248 = sand.u32 %s44, 1
        %s249 = scalar_lea.sflag [#allocation3], %s248
        %s250 = sand.u32 %s44, 1
        %s251 = smul.addr %s250, 32
        %s252 = scalar_lea.vmem [#allocation2], %s251
        %p253 = pneg %p57
        %p254 = pneg %p54
        %p255 = scmp.lt.s32.totalorder %s26, 1
        %s256 = scalar_select %p255, %s26, 1
        %s257 = smul.addr %s256, 4
        %s258 = smul.addr %s257, 4
        %s259 = scalar_lea.vmem %s1, %s258
        %p260 = pneg %p83
        %p261 = pneg %p80
        %p262 = pneg %p104
        %p263 = pneg %p101
        %p264 = pneg %p125
        %p265 = pneg %p122
        %p266 = pneg %p146
        %p267 = pneg %p143
        %p268 = pneg %p174
        %p269 = pneg %p171
        %s270 = sand.u32 %s161, 1
        %s271 = scalar_lea.sflag [#allocation4], %s270
        %s272 = sand.u32 %s161, 1
        %s273 = smul.addr %s272, 4
        %s274 = scalar_lea.vmem [#allocation5], %s273
        %p275 = scmp.lt.s32.totalorder %s26, 1
        %s276 = scalar_select %p275, %s26, 1
        %s277 = smul.addr %s276, 4
        %s278 = smul.addr %s277, 4
        %s279 = scalar_lea.vmem %s1, %s278
        %v281 = vld [vmem:[%s2] sm:$0xf]
        %v282 = vld [vmem:[%s2 + $0x4] sm:$0xf]
        %v283 = vld [vmem:[%s2 + $0x8] sm:$0xf]
        %v284 = vld [vmem:[%s2 + $0xc] sm:$0xf]
        %v285 = vld [vmem:[%s3] sm:$0x3]
        %v286 = vld [vmem:[%s4] sm:$0xf]
        %288 = vset.pattern.permute.xlu0 0
        %289 = vperm.xlu0 %288, %v286
        %v290 = vpop.permute.xlu0 %289
        %v292 = vld [vmem:[%s243] sm:$0xff]
        %v293 = vld [vmem:[%s243 + $0x8] sm:$0xff]
        %v294 = vld [vmem:[%s243 + $0x10] sm:$0xff]
        %v295 = vld [vmem:[%s243 + $0x18] sm:$0xff]
        %v296 = vpack.c.bf16 %v293, %v292
        %v297 = vpack.c.bf16 %v295, %v294
        %v298 = vld [vmem:[%s279] sm:$0xf]
        %v299 = vld [vmem:[%s279 + $0x4] sm:$0xf]
        %v300 = vld [vmem:[%s279 + $0x8] sm:$0xf]
        %v301 = vld [vmem:[%s279 + $0xc] sm:$0xf]
        %v302 = vunpack.c.l.bf16 %v298
        %v303 = vunpack.c.l.bf16 %v299
        %v304 = vunpack.c.l.bf16 %v300
        %v305 = vunpack.c.l.bf16 %v301
        %307 = vset.pattern.permute.xlu0 0
        %308 = vperm.xlu0 %307, %v302
        %v309 = vpop.permute.xlu0 %308
        %312 = vset.pattern.permute.xlu0 0
        %313 = vperm.xlu0 %312, %v303
        %v314 = vpop.permute.xlu0 %313
        %317 = vset.pattern.permute.xlu0 0
        %318 = vperm.xlu0 %317, %v304
        %v319 = vpop.permute.xlu0 %318
        %322 = vset.pattern.permute.xlu0 0
        %323 = vperm.xlu0 %322, %v305
        %v324 = vpop.permute.xlu0 %323
        %v330 = vunpack.c.l.b16 %v281
        %v331 = vunpack.c.l.b16 %v282
        %v332 = vunpack.c.l.b16 %v283
        %v333 = vunpack.c.l.b16 %v284
        %v334 = vpack.c.b16 %v331, %v330
        %v335 = vpack.c.b16 %v333, %v332
        %vm336 = vcmask 261120
        %v338 = vsel %vm336, %v334, 0
        %v341 = vsel %vm336, %v335, 0
        %343 = vmatprep.subr.bf16.mxu0 0
        %344 = vmatpush1.bf16.msra.mxu0 %v296
        %345 = vmatprep.subr.bf16.mxu0 0
        %346 = vmatpush1.bf16.msra.mxu0 %v297
        %347 = vmatprep.subr.bf16.mxu0 0
        %348 = vmatpush1.bf16.msra.mxu0 0
        %349 = vmatprep.subr.bf16.mxu0 0
        %350 = vmatpush1.bf16.msra.mxu0 0
        %351 = vmatprep.subr.bf16.mxu0 0
        %352 = vmatpush1.bf16.msra.mxu0 0
        %353 = vmatprep.subr.bf16.mxu0 0
        %354 = vmatpush1.bf16.msra.mxu0 0
        %355 = vmatprep.subr.bf16.mxu0 0
        %356 = vmatpush1.bf16.msra.mxu0 0
        %357 = vmatprep.subr.bf16.mxu0 0
        %358 = vmatpush1.bf16.msra.mxu0 0
        %359 = vmatprep.subr.bf16.mxu0 0
        %360 = vmatpush1.bf16.msra.mxu0 0
        %361 = vmatprep.subr.bf16.mxu0 0
        %362 = vmatpush1.bf16.msra.mxu0 0
        %363 = vmatprep.subr.bf16.mxu0 0
        %364 = vmatpush1.bf16.msra.mxu0 0
        %365 = vmatprep.subr.bf16.mxu0 0
        %366 = vmatpush1.bf16.msra.mxu0 0
        %367 = vmatprep.subr.bf16.mxu0 0
        %368 = vmatpush1.bf16.msra.mxu0 0
        %369 = vmatprep.subr.bf16.mxu0 0
        %370 = vmatpush1.bf16.msra.mxu0 0
        %371 = vmatprep.subr.bf16.mxu0 0
        %372 = vmatpush1.bf16.msra.mxu0 0
        %373 = vmatprep.subr.bf16.mxu0 0
        %374 = vmatpush1.bf16.msra.mxu0 0
        %375 = vmatprep.mubr.bf16.mxu0 0
        %376 = vmatmul.mubr.bf16.gmra.mrb[0].mxu0 %v338
        %v377 = vpop.f32.mrb[0].mxu0
        %v378 = vadd.f32 %v309, %v377
        %v379 = vpop.f32.mrb[0].mxu0
        %v380 = vpop.f32.mrb[0].mxu0
        %v381 = vadd.f32 %v314, %v380
        %v382 = vpop.f32.mrb[0].mxu0
        %383 = vmatprep.mubr.bf16.mxu0 0
        %384 = vmatmul.mubr.bf16.gmra.mrb[0].mxu0 %v341
        %v385 = vpop.f32.mrb[0].mxu0
        %v386 = vadd.f32 %v319, %v385
        %v387 = vpop.f32.mrb[0].mxu0
        %v388 = vpop.f32.mrb[0].mxu0
        %v389 = vadd.f32 %v324, %v388
        %v390 = vpop.f32.mrb[0].mxu0
        %391 = vdwg.mxu0
        %v392 = vmax.f32 %v378, 0.0
        %v393 = vmax.f32 %v381, 0.0
        %v394 = vmax.f32 %v386, 0.0
        %v395 = vmax.f32 %v389, 0.0
        %v396 = vpack.c.bf16 %v393, %v392
        %v397 = vpack.c.bf16 %v395, %v394
        %v399 = vsel %vm336, %v285, 0
        %401 = vmatprep.subr.bf16.mxu0 0
        %402 = vmatpush1.bf16.msra.mxu0 %v396
        %403 = vmatprep.subr.bf16.mxu0 0
        %404 = vmatpush1.bf16.msra.mxu0 %v397
        %405 = vmatprep.subr.bf16.mxu0 0
        %406 = vmatpush1.bf16.msra.mxu0 0
        %407 = vmatprep.subr.bf16.mxu0 0
        %408 = vmatpush1.bf16.msra.mxu0 0
        %409 = vmatprep.subr.bf16.mxu0 0
        %410 = vmatpush1.bf16.msra.mxu0 0
        %411 = vmatprep.subr.bf16.mxu0 0
        %412 = vmatpush1.bf16.msra.mxu0 0
        %413 = vmatprep.subr.bf16.mxu0 0
        %414 = vmatpush1.bf16.msra.mxu0 0
        %415 = vmatprep.subr.bf16.mxu0 0
        %416 = vmatpush1.bf16.msra.mxu0 0
        %417 = vmatprep.subr.bf16.mxu0 0
        %418 = vmatpush1.bf16.msra.mxu0 0
        %419 = vmatprep.subr.bf16.mxu0 0
        %420 = vmatpush1.bf16.msra.mxu0 0
        %421 = vmatprep.subr.bf16.mxu0 0
        %422 = vmatpush1.bf16.msra.mxu0 0
        %423 = vmatprep.subr.bf16.mxu0 0
        %424 = vmatpush1.bf16.msra.mxu0 0
        %425 = vmatprep.subr.bf16.mxu0 0
        %426 = vmatpush1.bf16.msra.mxu0 0
        %427 = vmatprep.subr.bf16.mxu0 0
        %428 = vmatpush1.bf16.msra.mxu0 0
        %429 = vmatprep.subr.bf16.mxu0 0
        %430 = vmatpush1.bf16.msra.mxu0 0
        %431 = vmatprep.subr.bf16.mxu0 0
        %432 = vmatpush1.bf16.msra.mxu0 0
        %433 = vmatprep.mubr.bf16.mxu0 0
        %434 = vmatmul.mubr.bf16.gmra.mrb[0].mxu0 %v399
        %v435 = vpop.f32.mrb[0].mxu0
        %v436 = vadd.f32 %v290, %v435
        %v437 = vpop.f32.mrb[0].mxu0
        %v438 = vpop.f32.mrb[0].mxu0
        %v439 = vpop.f32.mrb[0].mxu0
        %440 = vdwg.mxu0
        %vm441 = vcmask 519168
        %442 = vst.msk [vmem:[%s274] sm:$0xf] %vm441, %v436
        %s443 = sand.u32 %s161, 1
        %s444 = scalar_lea.sflag [#allocation4], %s443
        %s445 = sand.u32 %s161, 1
        %s446 = smul.addr %s445, 4
        %s447 = scalar_lea.vmem [#allocation5], %s446
        // Predicated region
        $region45: #{tpu_custom_call.1} parent=39 // pred_check
          %p448 = pneg %p171
        $region46: #{tpu_custom_call.1} parent=39 // pred_check_branch
          %450 = sbr.rel (%p448) target = $region48
        $region47: #{tpu_custom_call.1} parent=39 // pred_region
          %s452 = ssub.s32 64, 64
          %453 = vsyncadd %s444, %s452
          %s454 = sadd.s32 %s27, %s26
          %s455 = smul.addr %s454, 64
          %s456 = scalar_lea.hbm %s5, %s455
          %s458 = sshll.u32 %s447, 4
          %s459 = int_to_ptr.vmem [resolvable:$true] %s458
          %461 = dma.vmem_to_hbm [thread:$0]  %s459, 64, %s456, %s444
        $region48: #{tpu_custom_call.1} parent=39 // pred_fallthru
          _
      $region40: #{tpu_custom_call.1} parent=5 // pred_fallthru
        _
      %p462 = scmp.le.s32.totalorder 2, %s17
      // Predicated region
      $region49: #{tpu_custom_call.1} parent=5 // pred_check
        %p463 = pneg %p462
      $region50: #{tpu_custom_call.1} parent=5 // pred_check_branch
        %465 = sbr.rel (%p463) target = $region52
      $region51: #{tpu_custom_call.1} parent=5 // pred_region
        %s466 = ssub.s32 %s17, 2
        // Predicated region
        $region53: #{tpu_custom_call.1} parent=51 // pred_check
          %p467 = pneg %p177
        $region54: #{tpu_custom_call.1} parent=51 // pred_check_branch
          %469 = sbr.rel (%p467) target = $region56
        $region55: #{tpu_custom_call.1} parent=51 // pred_region
          %s470 = sand.u32 %s162, 1
          %s471 = scalar_lea.sflag [#allocation4], %s470
          %s472 = sand.u32 %s162, 1
          %s473 = smul.addr %s472, 4
          %s474 = scalar_lea.vmem [#allocation5], %s473
          %475 = dma.done %s471, 64
        $region56: #{tpu_custom_call.1} parent=51 // pred_fallthru
          _
      $region52: #{tpu_custom_call.1} parent=5 // pred_fallthru
        _
    $region6: #{tpu_custom_call.1} parent=1 // loop_footer
      %s21 = sadd.s32 1, %s17
    $region7: #{tpu_custom_call.1} parent=1 // loop_footer_branch
      %16 = sbr.rel target = $region3
    $region8: #{tpu_custom_call.1} parent=1 // loop_exit
      _
    %476 = vsyncpa [#allocation3], 1
    %s477 = scalar_lea.sflag [#allocation3], 1
    %478 = vsyncpa %s477, 1
    %479 = vsyncpa [#allocation4], 1
    %s480 = scalar_lea.sflag [#allocation4], 1
    %481 = vsyncpa %s480, 1

</llo_original>
